<compile_context>
chip_gen: v7x
topology: tpu7x:2x2x1
jax: 0.10.0
libtpu: 0.0.40
codegen_flags: <defaults>
</compile_context>

<pallas_src>
import functools

import jax
import jax.numpy as jnp
from jax.experimental import pallas as pl
from jax.experimental.pallas import tpu as pltpu


def _round_up(x: int, m: int) -> int:
    return ((x + m - 1) // m) * m


def _fused_mlp_kernel(*refs, num_layers: int):
    """refs = (x_ref, w0_ref, b0_ref, w1_ref, b1_ref, ..., o_ref).

    x_ref:  (tm, in_dim) row tile
    wL_ref: (in_L, out_L)  -- full array, VMEM-resident (constant index_map)
    bL_ref: (1, out_L)     -- full array, VMEM-resident
    o_ref:  (tm, out_dim)  -- only the final layer's output is stored to HBM
    """
    x_ref, o_ref = refs[0], refs[-1]
    wb = refs[1:-1]

    h = x_ref[...]
    for li in range(num_layers):
        w = wb[2 * li][...]
        b = wb[2 * li + 1][...]
        y = jnp.dot(h, w, preferred_element_type=jnp.float32)  # MXU, fp32 acc
        y = y + b.astype(jnp.float32)                           # fp32 epilogue
        if li < num_layers - 1:
            y = jnp.maximum(y, 0.0)
            h = y.astype(w.dtype)   # feed next matmul in compute dtype
        else:
            h = y
    o_ref[...] = h.astype(o_ref.dtype)


def _fused_mlp_2d(x2d, flat_params, *, num_layers: int, tm: int, out_dtype):
    """x2d: (M, in_dim). flat_params: (w0_t, b0, w1_t, b1, ...) with
    w_t: (in_L, out_L) and b: (1, out_L)."""
    M, in_dim = x2d.shape
    out_dim = flat_params[-2].shape[1]

    # Large row tile for MXU / pipeline efficiency, but never larger than the
    # (sublane-rounded) problem.  Pad M up to a whole number of tiles instead
    # of requiring divisibility; padded rows are sliced off afterwards.
    tm_eff = min(tm, _round_up(M, 8))
    m_pad = _round_up(M, tm_eff)
    if m_pad != M:
        x2d = jnp.pad(x2d, ((0, m_pad - M), (0, 0)))

    grid = (m_pad // tm_eff,)

    in_specs = [pl.BlockSpec((tm_eff, in_dim), lambda i: (i, 0))]
    for li in range(num_layers):
        w_t = flat_params[2 * li]
        b2 = flat_params[2 * li + 1]
        # Constant index_map + full-array block => resident across the grid.
        in_specs.append(pl.BlockSpec(w_t.shape, lambda i: (0, 0)))
        in_specs.append(pl.BlockSpec(b2.shape, lambda i: (0, 0)))

    kernel = functools.partial(_fused_mlp_kernel, num_layers=num_layers)
    out = pl.pallas_call(
        kernel,
        out_shape=jax.ShapeDtypeStruct((m_pad, out_dim), out_dtype),
        grid_spec=pltpu.PrefetchScalarGridSpec(
            num_scalar_prefetch=0,
            grid=grid,
            in_specs=in_specs,
            out_specs=pl.BlockSpec((tm_eff, out_dim), lambda i: (i, 0)),
        ),
        compiler_params=pltpu.CompilerParams(
            dimension_semantics=("parallel",)),  # megacore sharding on v7x
    )(x2d, *flat_params)
    return out[:M]


@functools.partial(jax.jit, static_argnames=("num_layers", "tm"))
def _mlp_apply(x, flat_params, *, num_layers: int, tm: int):
    lead = x.shape[:-1]
    out_dtype = x.dtype
    compute_dtype = flat_params[0].dtype
    x2d = x.reshape(-1, x.shape[-1]).astype(compute_dtype)
    y2d = _fused_mlp_2d(x2d, flat_params, num_layers=num_layers, tm=tm,
                        out_dtype=out_dtype)
    return y2d.reshape(lead + (y2d.shape[-1],))


class MLPPallas:
    """Mirror of trackformer's MLP: num_layers Linear layers, ReLU between.

    Weights are stored pre-transposed as (in, out) and biases as (1, out) so
    the hot path is a single fused pallas_call with no glue transposes.
    Set param_dtype=jnp.bfloat16 on v6e/v7x to halve bandwidth / use the
    bf16 MXU (accumulation stays fp32 inside the kernel).
    """

    def __init__(self, input_dim, hidden_dim, output_dim, num_layers, key,
                 param_dtype=jnp.float32, tm=256):
        self.num_layers = num_layers
        self.tm = tm
        h = [hidden_dim] * (num_layers - 1)
        dims = list(zip([input_dim] + h, h + [output_dim]))

        self.torch_params = []   # PyTorch-layout (out, in) / (out,) for ref math
        flat = []
        for (n, k) in dims:
            key, wk, bk = jax.random.split(key, 3)
            bound = 1.0 / float(n) ** 0.5     # PyTorch default-ish scale
            w = jax.random.uniform(wk, (k, n), jnp.float32, -bound, bound)
            b = jax.random.uniform(bk, (k,), jnp.float32, -bound, bound)
            self.torch_params.append((w, b))
            flat.append(jnp.asarray(w.T, dtype=param_dtype))          # (in, out)
            flat.append(jnp.asarray(b.reshape(1, -1), dtype=param_dtype))
        self.flat_params = tuple(flat)

    def __call__(self, x):
        return _mlp_apply(x, self.flat_params,
                          num_layers=self.num_layers, tm=self.tm)


def _reference(x, torch_params, num_layers):
    ref = x.reshape(-1, x.shape[-1])
    for i, (w, b) in enumerate(torch_params):
        ref = ref @ w.T + b
        if i < num_layers - 1:
            ref = jnp.maximum(ref, 0.0)
    return ref.reshape(x.shape[:-1] + (ref.shape[-1],))


if __name__ == "__main__":
    key = jax.random.PRNGKey(0)
    key, xk, xk2, pk = jax.random.split(key, 4)

    batch, seq = 2, 8
    input_dim, hidden_dim, output_dim, num_layers = 32, 64, 16, 3

    mlp = MLPPallas(input_dim, hidden_dim, output_dim, num_layers, pk)

    # Case 1: M divisible by 8.
    x = jax.random.normal(xk, (batch, seq, input_dim), jnp.float32)
    out = mlp(x)
    jax.block_until_ready(out)
    ref = _reference(x, mlp.torch_params, num_layers)
    assert out.shape == (batch, seq, output_dim)
    assert jnp.allclose(out, ref, atol=1e-4, rtol=1e-4), \
        float(jnp.max(jnp.abs(out - ref)))

    # Case 2: ragged M (3*5=15 tokens) exercising the cdiv/zero-pad tail path.
    x2 = jax.random.normal(xk2, (3, 5, input_dim), jnp.float32)
    out2 = mlp(x2)
    jax.block_until_ready(out2)
    ref2 = _reference(x2, mlp.torch_params, num_layers)
    assert out2.shape == (3, 5, output_dim)
    assert jnp.allclose(out2, ref2, atol=1e-4, rtol=1e-4), \
        float(jnp.max(jnp.abs(out2 - ref2)))

    print("KERNEL_OK")
</pallas_src>

<mosaic_0001>
module attributes {stable_mosaic.version = 11 : i64} {
  func.func @_fused_mlp_kernel(%arg0: i32, %arg1: memref<16x32xf32, #tpu.memory_space<vmem>>, %arg2: memref<32x64xf32, #tpu.memory_space<vmem>>, %arg3: memref<1x64xf32, #tpu.memory_space<vmem>>, %arg4: memref<64x64xf32, #tpu.memory_space<vmem>>, %arg5: memref<1x64xf32, #tpu.memory_space<vmem>>, %arg6: memref<64x16xf32, #tpu.memory_space<vmem>>, %arg7: memref<1x16xf32, #tpu.memory_space<vmem>>, %arg8: memref<16x16xf32, #tpu.memory_space<vmem>>) attributes {dimension_semantics = [#tpu.dimension_semantics<parallel>], iteration_bounds = array<i64: 1>, scalar_prefetch = 0 : i64, scratch_operands = 0 : i64, tpu.core_type = #tpu.core_type<tc>, window_params = [{transform_indices = @transform_0, window_bounds = array<i64: 16, 32>}, {pipeline_mode = #tpu.pipeline_mode<synchronous>, transform_indices = @transform_1, window_bounds = array<i64: 32, 64>}, {pipeline_mode = #tpu.pipeline_mode<synchronous>, transform_indices = @transform_2, window_bounds = array<i64: 1, 64>}, {pipeline_mode = #tpu.pipeline_mode<synchronous>, transform_indices = @transform_3, window_bounds = array<i64: 64, 64>}, {pipeline_mode = #tpu.pipeline_mode<synchronous>, transform_indices = @transform_4, window_bounds = array<i64: 1, 64>}, {pipeline_mode = #tpu.pipeline_mode<synchronous>, transform_indices = @transform_5, window_bounds = array<i64: 64, 16>}, {pipeline_mode = #tpu.pipeline_mode<synchronous>, transform_indices = @transform_6, window_bounds = array<i64: 1, 16>}, {transform_indices = @transform_7, window_bounds = array<i64: 16, 16>}]} {
    %c0 = arith.constant 0 : index
    %c0_0 = arith.constant 0 : index
    %0 = vector.load %arg1[%c0, %c0_0] : memref<16x32xf32, #tpu.memory_space<vmem>>, vector<16x32xf32>
    %c0_1 = arith.constant 0 : index
    %c0_2 = arith.constant 0 : index
    %1 = vector.load %arg2[%c0_1, %c0_2] : memref<32x64xf32, #tpu.memory_space<vmem>>, vector<32x64xf32>
    %c0_3 = arith.constant 0 : index
    %c0_4 = arith.constant 0 : index
    %2 = vector.load %arg3[%c0_3, %c0_4] : memref<1x64xf32, #tpu.memory_space<vmem>>, vector<1x64xf32>
    %cst = arith.constant dense<0.000000e+00> : vector<16x64xf32>
    %3 = tpu.matmul %0, %1, %cst {dimension_numbers = #tpu.dot_dimension_numbers<[1], [0], [0], [1], [0, 0, 1, 1], [], []>} : vector<16x32xf32>, vector<32x64xf32>, vector<16x64xf32> -> vector<16x64xf32>
    %4 = vector.broadcast %2 : vector<1x64xf32> to vector<16x64xf32>
    %5 = arith.addf %3, %4 : vector<16x64xf32>
    %cst_5 = arith.constant 0.000000e+00 : f32
    %6 = vector.broadcast %cst_5 : f32 to vector<16x64xf32>
    %7 = arith.maximumf %5, %6 : vector<16x64xf32>
    %c0_6 = arith.constant 0 : index
    %c0_7 = arith.constant 0 : index
    %8 = vector.load %arg4[%c0_6, %c0_7] : memref<64x64xf32, #tpu.memory_space<vmem>>, vector<64x64xf32>
    %c0_8 = arith.constant 0 : index
    %c0_9 = arith.constant 0 : index
    %9 = vector.load %arg5[%c0_8, %c0_9] : memref<1x64xf32, #tpu.memory_space<vmem>>, vector<1x64xf32>
    %cst_10 = arith.constant dense<0.000000e+00> : vector<16x64xf32>
    %10 = tpu.matmul %7, %8, %cst_10 {dimension_numbers = #tpu.dot_dimension_numbers<[1], [0], [0], [1], [0, 0, 1, 1], [], []>} : vector<16x64xf32>, vector<64x64xf32>, vector<16x64xf32> -> vector<16x64xf32>
    %11 = vector.broadcast %9 : vector<1x64xf32> to vector<16x64xf32>
    %12 = arith.addf %10, %11 : vector<16x64xf32>
    %cst_11 = arith.constant 0.000000e+00 : f32
    %13 = vector.broadcast %cst_11 : f32 to vector<16x64xf32>
    %14 = arith.maximumf %12, %13 : vector<16x64xf32>
    %c0_12 = arith.constant 0 : index
    %c0_13 = arith.constant 0 : index
    %15 = vector.load %arg6[%c0_12, %c0_13] : memref<64x16xf32, #tpu.memory_space<vmem>>, vector<64x16xf32>
    %c0_14 = arith.constant 0 : index
    %c0_15 = arith.constant 0 : index
    %16 = vector.load %arg7[%c0_14, %c0_15] : memref<1x16xf32, #tpu.memory_space<vmem>>, vector<1x16xf32>
    %cst_16 = arith.constant dense<0.000000e+00> : vector<16x16xf32>
    %17 = tpu.matmul %14, %15, %cst_16 {dimension_numbers = #tpu.dot_dimension_numbers<[1], [0], [0], [1], [0, 0, 1, 1], [], []>} : vector<16x64xf32>, vector<64x16xf32>, vector<16x16xf32> -> vector<16x16xf32>
    %18 = vector.broadcast %16 : vector<1x16xf32> to vector<16x16xf32>
    %19 = arith.addf %17, %18 : vector<16x16xf32>
    %c0_17 = arith.constant 0 : index
    %c0_18 = arith.constant 0 : index
    %20 = vector.load %arg8[%c0_17, %c0_18] : memref<16x16xf32, #tpu.memory_space<vmem>>, vector<16x16xf32>
    tpu.vector_store %arg8[%c0_17, %c0_18], %19 {strides = array<i32>} : memref<16x16xf32, #tpu.memory_space<vmem>>, vector<16x16xf32>,
    return
  }
  func.func @transform_0(%arg0: i32) -> (i32, i32) {
    %c0_i32 = arith.constant 0 : i32
    %c0_i32_0 = arith.constant 0 : i32
    return %arg0, %c0_i32 : i32, i32
  }
  func.func @transform_1(%arg0: i32) -> (i32, i32) {
    %c0_i32 = arith.constant 0 : i32
    %c0_i32_0 = arith.constant 0 : i32
    %c0_i32_1 = arith.constant 0 : i32
    return %c0_i32, %c0_i32_0 : i32, i32
  }
  func.func @transform_2(%arg0: i32) -> (i32, i32) {
    %c0_i32 = arith.constant 0 : i32
    %c0_i32_0 = arith.constant 0 : i32
    %c0_i32_1 = arith.constant 0 : i32
    return %c0_i32, %c0_i32_0 : i32, i32
  }
  func.func @transform_3(%arg0: i32) -> (i32, i32) {
    %c0_i32 = arith.constant 0 : i32
    %c0_i32_0 = arith.constant 0 : i32
    %c0_i32_1 = arith.constant 0 : i32
    return %c0_i32, %c0_i32_0 : i32, i32
  }
  func.func @transform_4(%arg0: i32) -> (i32, i32) {
    %c0_i32 = arith.constant 0 : i32
    %c0_i32_0 = arith.constant 0 : i32
    %c0_i32_1 = arith.constant 0 : i32
    return %c0_i32, %c0_i32_0 : i32, i32
  }
  func.func @transform_5(%arg0: i32) -> (i32, i32) {
    %c0_i32 = arith.constant 0 : i32
    %c0_i32_0 = arith.constant 0 : i32
    %c0_i32_1 = arith.constant 0 : i32
    return %c0_i32, %c0_i32_0 : i32, i32
  }
  func.func @transform_6(%arg0: i32) -> (i32, i32) {
    %c0_i32 = arith.constant 0 : i32
    %c0_i32_0 = arith.constant 0 : i32
    %c0_i32_1 = arith.constant 0 : i32
    return %c0_i32, %c0_i32_0 : i32, i32
  }
  func.func @transform_7(%arg0: i32) -> (i32, i32) {
    %c0_i32 = arith.constant 0 : i32
    %c0_i32_0 = arith.constant 0 : i32
    return %arg0, %c0_i32 : i32, i32
  }
}

</mosaic_0001>

<llo_original>
// kernel: _mlp_apply.1
$region0: #{_mlp_apply.1}
  #allocation0 [shape = 'u32[]', space=smem, size = 0x4, offset = 0x4, fixed_abs, tag = 'smem constant byte address 0x4 - core index']
  #allocation1 [shape = 'u32[144,128]{1,0:T(1,128)}', space=vmem, size = 0x12000, scoped, tag = 'internal scratch']
  %s0 = inlined_call_operand.vmem [shape: f32[16,32], index: 0, kind: input, shape index: {}]
  %s1 = inlined_call_operand.hbm [shape: f32[32,64], index: 1, kind: input, shape index: {}]
  %s2 = inlined_call_operand.vmem [shape: f32[1,64], index: 2, kind: input, shape index: {}]
  %s3 = inlined_call_operand.vmem [shape: f32[64,64], index: 3, kind: input, shape index: {}]
  %s4 = inlined_call_operand.vmem [shape: f32[1,64], index: 4, kind: input, shape index: {}]
  %s5 = inlined_call_operand.vmem [shape: f32[64,16], index: 5, kind: input, shape index: {}]
  %s6 = inlined_call_operand.vmem [shape: f32[1,16], index: 6, kind: input, shape index: {}]
  %s7 = inlined_call_operand.hbm [shape: f32[16,16], index: 7, kind: output, shape index: {}]
  %s8 = sld [smem:[#allocation0]]
  $region42: #{_mlp_apply.1} parent=0
    _
  %s10 = ssub.s32 1, %s8
  %s11 = scalar_select 0, %s10, %s8
  $region1: #{_mlp_apply.1} parent=0
    #allocation2 [shape = 'u8[16384]{0}', space=vmem, size = 0x4000, scoped, tag = 'input window, operand 1, single buffered']
    #allocation3 [shape = 's32[1]{0}', space=sflag, size = 0x4, scoped, tag = 'scoped memory for _mlp_apply.1']
    #allocation4 [shape = 's32[1]{0}', space=sflag, size = 0x4, scoped, tag = 'scoped memory for _mlp_apply.1']
    #allocation5 [shape = 'u8[8192]{0}', space=vmem, size = 0x2000, scoped, tag = 'output window, operand 0, single buffered']
    %12 = vsyncpa [#allocation3], 0
    %13 = vsyncpa [#allocation4], 0
    // Predicated region
    $region2: #{_mlp_apply.1} parent=1 // pred_check
      _
    $region3: #{_mlp_apply.1} parent=1 // pred_check_branch
      %15 = sbr.rel (0) target = $region5
    $region4: #{_mlp_apply.1} parent=1 // pred_region
      _
    $region5: #{_mlp_apply.1} parent=1 // pred_fallthru
      _
    // Predicated region
    $region6: #{_mlp_apply.1} parent=1 // pred_check
      _
    $region7: #{_mlp_apply.1} parent=1 // pred_check_branch
      %17 = sbr.rel (0) target = $region9
    $region8: #{_mlp_apply.1} parent=1 // pred_region
      %s19 = ssub.s32 512, 512
      %20 = vsyncadd [#allocation3], %s19
      %s21 = sshll.u32 [#allocation2], 4
      %s22 = int_to_ptr.vmem [resolvable:$true] %s21
      %27 = dma.hbm_to_vmem [thread:$0]  %s1, 512, %s22, [#allocation3], 128, 128, 8
    $region9: #{_mlp_apply.1} parent=1 // pred_fallthru
      _
    // Predicated region
    $region10: #{_mlp_apply.1} parent=1 // pred_check
      _
    $region11: #{_mlp_apply.1} parent=1 // pred_check_branch
      %29 = sbr.rel (0) target = $region13
    $region12: #{_mlp_apply.1} parent=1 // pred_region
      _
    $region13: #{_mlp_apply.1} parent=1 // pred_fallthru
      _
    // Predicated region
    $region14: #{_mlp_apply.1} parent=1 // pred_check
      _
    $region15: #{_mlp_apply.1} parent=1 // pred_check_branch
      %31 = sbr.rel (0) target = $region17
    $region16: #{_mlp_apply.1} parent=1 // pred_region
      _
    $region17: #{_mlp_apply.1} parent=1 // pred_fallthru
      _
    // Predicated region
    $region18: #{_mlp_apply.1} parent=1 // pred_check
      _
    $region19: #{_mlp_apply.1} parent=1 // pred_check_branch
      %33 = sbr.rel (0) target = $region21
    $region20: #{_mlp_apply.1} parent=1 // pred_region
      _
    $region21: #{_mlp_apply.1} parent=1 // pred_fallthru
      _
    // Predicated region
    $region22: #{_mlp_apply.1} parent=1 // pred_check
      _
    $region23: #{_mlp_apply.1} parent=1 // pred_check_branch
      %35 = sbr.rel (0) target = $region25
    $region24: #{_mlp_apply.1} parent=1 // pred_region
      _
    $region25: #{_mlp_apply.1} parent=1 // pred_fallthru
      _
    // Predicated region
    $region26: #{_mlp_apply.1} parent=1 // pred_check
      _
    $region27: #{_mlp_apply.1} parent=1 // pred_check_branch
      %37 = sbr.rel (0) target = $region29
    $region28: #{_mlp_apply.1} parent=1 // pred_region
      _
    $region29: #{_mlp_apply.1} parent=1 // pred_fallthru
      _
    // Predicated region
    $region30: #{_mlp_apply.1} parent=1 // pred_check
      _
    $region31: #{_mlp_apply.1} parent=1 // pred_check_branch
      %39 = sbr.rel (0) target = $region33
    $region32: #{_mlp_apply.1} parent=1 // pred_region
      %40 = dma.done [#allocation3], 512
    $region33: #{_mlp_apply.1} parent=1 // pred_fallthru
      _
    %v41 = vld [vmem:[%s0] sm:$0xff]
    %v42 = vld [vmem:[%s0 + $0x8] sm:$0xff]
    %v43 = vld [vmem:[#allocation2] sm:$0xff]
    %v44 = vld [vmem:[#allocation2 + $0x8] sm:$0xff]
    %v45 = vld [vmem:[#allocation2 + $0x10] sm:$0xff]
    %v46 = vld [vmem:[#allocation2 + $0x18] sm:$0xff]
    %v47 = vld [vmem:[%s2] sm:$0x1]
    %v49 = vlaneseq
    %v50 = vshrl.u32 %v49, 7
    %v51 = vsub.s32 0, %v50
    %v52 = vrot.slane %v47, %v51
    %vm54 = vcmask 261120
    %v56 = vsel %vm54, %v41, 0
    %v59 = vsel %vm54, %v42, 0
    %61 = vmatprep.subr.mxu0 0.0
    %62 = vmatpush1.msra.mxu0 %v43
    %63 = vmatprep.subr.mxu0 0.0
    %64 = vmatpush1.msra.mxu0 %v44
    %65 = vmatprep.subr.mxu0 0.0
    %66 = vmatpush1.msra.mxu0 %v45
    %67 = vmatprep.subr.mxu0 0.0
    %68 = vmatpush1.msra.mxu0 %v46
    %69 = vmatprep.subr.mxu0 0.0
    %70 = vmatpush1.msra.mxu0 0.0
    %71 = vmatprep.subr.mxu0 0.0
    %72 = vmatpush1.msra.mxu0 0.0
    %73 = vmatprep.subr.mxu0 0.0
    %74 = vmatpush1.msra.mxu0 0.0
    %75 = vmatprep.subr.mxu0 0.0
    %76 = vmatpush1.msra.mxu0 0.0
    %77 = vmatprep.subr.mxu0 0.0
    %78 = vmatpush1.msra.mxu0 0.0
    %79 = vmatprep.subr.mxu0 0.0
    %80 = vmatpush1.msra.mxu0 0.0
    %81 = vmatprep.subr.mxu0 0.0
    %82 = vmatpush1.msra.mxu0 0.0
    %83 = vmatprep.subr.mxu0 0.0
    %84 = vmatpush1.msra.mxu0 0.0
    %85 = vmatprep.subr.mxu0 0.0
    %86 = vmatpush1.msra.mxu0 0.0
    %87 = vmatprep.subr.mxu0 0.0
    %88 = vmatpush1.msra.mxu0 0.0
    %89 = vmatprep.subr.mxu0 0.0
    %90 = vmatpush1.msra.mxu0 0.0
    %91 = vmatprep.subr.mxu0 0.0
    %92 = vmatpush1.msra.mxu0 0.0
    %93 = vmatprep.subr.mxu0 0.0
    %94 = vmatpush1.msra.mxu0 0.0
    %95 = vmatprep.subr.mxu0 0.0
    %96 = vmatpush1.msra.mxu0 0.0
    %97 = vmatprep.subr.mxu0 0.0
    %98 = vmatpush1.msra.mxu0 0.0
    %99 = vmatprep.subr.mxu0 0.0
    %100 = vmatpush1.msra.mxu0 0.0
    %101 = vmatprep.subr.mxu0 0.0
    %102 = vmatpush1.msra.mxu0 0.0
    %103 = vmatprep.subr.mxu0 0.0
    %104 = vmatpush1.msra.mxu0 0.0
    %105 = vmatprep.subr.mxu0 0.0
    %106 = vmatpush1.msra.mxu0 0.0
    %107 = vmatprep.subr.mxu0 0.0
    %108 = vmatpush1.msra.mxu0 0.0
    %109 = vmatprep.subr.mxu0 0.0
    %110 = vmatpush1.msra.mxu0 0.0
    %111 = vmatprep.subr.mxu0 0.0
    %112 = vmatpush1.msra.mxu0 0.0
    %113 = vmatprep.subr.mxu0 0.0
    %114 = vmatpush1.msra.mxu0 0.0
    %115 = vmatprep.subr.mxu0 0.0
    %116 = vmatpush1.msra.mxu0 0.0
    %117 = vmatprep.subr.mxu0 0.0
    %118 = vmatpush1.msra.mxu0 0.0
    %119 = vmatprep.subr.mxu0 0.0
    %120 = vmatpush1.msra.mxu0 0.0
    %121 = vmatprep.subr.mxu0 0.0
    %122 = vmatpush1.msra.mxu0 0.0
    %123 = vmatprep.subr.mxu0 0.0
    %124 = vmatpush1.msra.mxu0 0.0
    %125 = vmatprep.mubr.f32.mxu0 0.0
    %126 = vmatmul.mubr.f32.gmra.mrb[0].mxu0 %v56
    %v127 = vpop.f32.mrb[0].mxu0
    %v128 = vadd.f32 %v52, %v127
    %v129 = vpop.f32.mrb[0].mxu0
    %130 = vmatprep.mubr.f32.mxu0 0.0
    %131 = vmatmul.mubr.f32.gmra.mrb[0].mxu0 %v59
    %v132 = vpop.f32.mrb[0].mxu0
    %v133 = vadd.f32 %v52, %v132
    %v134 = vpop.f32.mrb[0].mxu0
    %135 = vdwg.mxu0
    %v136 = vmax.f32 %v128, 0.0
    %v137 = vmax.f32 %v133, 0.0
    %v138 = vld [vmem:[%s3] sm:$0xff]
    %v139 = vld [vmem:[%s3 + $0x8] sm:$0xff]
    %v140 = vld [vmem:[%s3 + $0x10] sm:$0xff]
    %v141 = vld [vmem:[%s3 + $0x18] sm:$0xff]
    %v142 = vld [vmem:[%s3 + $0x20] sm:$0xff]
    %v143 = vld [vmem:[%s3 + $0x28] sm:$0xff]
    %v144 = vld [vmem:[%s3 + $0x30] sm:$0xff]
    %v145 = vld [vmem:[%s3 + $0x38] sm:$0xff]
    %v146 = vld [vmem:[%s4] sm:$0x1]
    %v148 = vlaneseq
    %v149 = vshrl.u32 %v148, 7
    %v150 = vsub.s32 0, %v149
    %v151 = vrot.slane %v146, %v150
    %vm153 = vcmask 523264
    %v155 = vsel %vm153, %v136, 0
    %v158 = vsel %vm153, %v137, 0
    %160 = vmatprep.subr.mxu0 0.0
    %161 = vmatpush1.msra.mxu0 %v138
    %162 = vmatprep.subr.mxu0 0.0
    %163 = vmatpush1.msra.mxu0 %v139
    %164 = vmatprep.subr.mxu0 0.0
    %165 = vmatpush1.msra.mxu0 %v140
    %166 = vmatprep.subr.mxu0 0.0
    %167 = vmatpush1.msra.mxu0 %v141
    %168 = vmatprep.subr.mxu0 0.0
    %169 = vmatpush1.msra.mxu0 %v142
    %170 = vmatprep.subr.mxu0 0.0
    %171 = vmatpush1.msra.mxu0 %v143
    %172 = vmatprep.subr.mxu0 0.0
    %173 = vmatpush1.msra.mxu0 %v144
    %174 = vmatprep.subr.mxu0 0.0
    %175 = vmatpush1.msra.mxu0 %v145
    %176 = vmatprep.subr.mxu0 0.0
    %177 = vmatpush1.msra.mxu0 0.0
    %178 = vmatprep.subr.mxu0 0.0
    %179 = vmatpush1.msra.mxu0 0.0
    %180 = vmatprep.subr.mxu0 0.0
    %181 = vmatpush1.msra.mxu0 0.0
    %182 = vmatprep.subr.mxu0 0.0
    %183 = vmatpush1.msra.mxu0 0.0
    %184 = vmatprep.subr.mxu0 0.0
    %185 = vmatpush1.msra.mxu0 0.0
    %186 = vmatprep.subr.mxu0 0.0
    %187 = vmatpush1.msra.mxu0 0.0
    %188 = vmatprep.subr.mxu0 0.0
    %189 = vmatpush1.msra.mxu0 0.0
    %190 = vmatprep.subr.mxu0 0.0
    %191 = vmatpush1.msra.mxu0 0.0
    %192 = vmatprep.subr.mxu0 0.0
    %193 = vmatpush1.msra.mxu0 0.0
    %194 = vmatprep.subr.mxu0 0.0
    %195 = vmatpush1.msra.mxu0 0.0
    %196 = vmatprep.subr.mxu0 0.0
    %197 = vmatpush1.msra.mxu0 0.0
    %198 = vmatprep.subr.mxu0 0.0
    %199 = vmatpush1.msra.mxu0 0.0
    %200 = vmatprep.subr.mxu0 0.0
    %201 = vmatpush1.msra.mxu0 0.0
    %202 = vmatprep.subr.mxu0 0.0
    %203 = vmatpush1.msra.mxu0 0.0
    %204 = vmatprep.subr.mxu0 0.0
    %205 = vmatpush1.msra.mxu0 0.0
    %206 = vmatprep.subr.mxu0 0.0
    %207 = vmatpush1.msra.mxu0 0.0
    %208 = vmatprep.subr.mxu0 0.0
    %209 = vmatpush1.msra.mxu0 0.0
    %210 = vmatprep.subr.mxu0 0.0
    %211 = vmatpush1.msra.mxu0 0.0
    %212 = vmatprep.subr.mxu0 0.0
    %213 = vmatpush1.msra.mxu0 0.0
    %214 = vmatprep.subr.mxu0 0.0
    %215 = vmatpush1.msra.mxu0 0.0
    %216 = vmatprep.subr.mxu0 0.0
    %217 = vmatpush1.msra.mxu0 0.0
    %218 = vmatprep.subr.mxu0 0.0
    %219 = vmatpush1.msra.mxu0 0.0
    %220 = vmatprep.subr.mxu0 0.0
    %221 = vmatpush1.msra.mxu0 0.0
    %222 = vmatprep.subr.mxu0 0.0
    %223 = vmatpush1.msra.mxu0 0.0
    %224 = vmatprep.mubr.f32.mxu0 0.0
    %225 = vmatmul.mubr.f32.gmra.mrb[0].mxu0 %v155
    %v226 = vpop.f32.mrb[0].mxu0
    %v227 = vadd.f32 %v151, %v226
    %v228 = vpop.f32.mrb[0].mxu0
    %229 = vmatprep.mubr.f32.mxu0 0.0
    %230 = vmatmul.mubr.f32.gmra.mrb[0].mxu0 %v158
    %v231 = vpop.f32.mrb[0].mxu0
    %v232 = vadd.f32 %v151, %v231
    %v233 = vpop.f32.mrb[0].mxu0
    %234 = vdwg.mxu0
    %v235 = vmax.f32 %v227, 0.0
    %v236 = vmax.f32 %v232, 0.0
    %v237 = vld [vmem:[%s5] sm:$0xff]
    %v238 = vld [vmem:[%s5 + $0x8] sm:$0xff]
    %v239 = vld [vmem:[%s5 + $0x10] sm:$0xff]
    %v240 = vld [vmem:[%s5 + $0x18] sm:$0xff]
    %v241 = vld [vmem:[%s5 + $0x20] sm:$0xff]
    %v242 = vld [vmem:[%s5 + $0x28] sm:$0xff]
    %v243 = vld [vmem:[%s5 + $0x30] sm:$0xff]
    %v244 = vld [vmem:[%s5 + $0x38] sm:$0xff]
    %v245 = vld [vmem:[%s6] sm:$0x1]
    %v247 = vlaneseq
    %v248 = vshrl.u32 %v247, 7
    %v249 = vsub.s32 0, %v248
    %v250 = vrot.slane %v245, %v249
    %v253 = vsel %vm153, %v235, 0
    %v256 = vsel %vm153, %v236, 0
    %258 = vmatprep.subr.mxu0 0.0
    %259 = vmatpush1.msra.mxu0 %v237
    %260 = vmatprep.subr.mxu0 0.0
    %261 = vmatpush1.msra.mxu0 %v238
    %262 = vmatprep.subr.mxu0 0.0
    %263 = vmatpush1.msra.mxu0 %v239
    %264 = vmatprep.subr.mxu0 0.0
    %265 = vmatpush1.msra.mxu0 %v240
    %266 = vmatprep.subr.mxu0 0.0
    %267 = vmatpush1.msra.mxu0 %v241
    %268 = vmatprep.subr.mxu0 0.0
    %269 = vmatpush1.msra.mxu0 %v242
    %270 = vmatprep.subr.mxu0 0.0
    %271 = vmatpush1.msra.mxu0 %v243
    %272 = vmatprep.subr.mxu0 0.0
    %273 = vmatpush1.msra.mxu0 %v244
    %274 = vmatprep.subr.mxu0 0.0
    %275 = vmatpush1.msra.mxu0 0.0
    %276 = vmatprep.subr.mxu0 0.0
    %277 = vmatpush1.msra.mxu0 0.0
    %278 = vmatprep.subr.mxu0 0.0
    %279 = vmatpush1.msra.mxu0 0.0
    %280 = vmatprep.subr.mxu0 0.0
    %281 = vmatpush1.msra.mxu0 0.0
    %282 = vmatprep.subr.mxu0 0.0
    %283 = vmatpush1.msra.mxu0 0.0
    %284 = vmatprep.subr.mxu0 0.0
    %285 = vmatpush1.msra.mxu0 0.0
    %286 = vmatprep.subr.mxu0 0.0
    %287 = vmatpush1.msra.mxu0 0.0
    %288 = vmatprep.subr.mxu0 0.0
    %289 = vmatpush1.msra.mxu0 0.0
    %290 = vmatprep.subr.mxu0 0.0
    %291 = vmatpush1.msra.mxu0 0.0
    %292 = vmatprep.subr.mxu0 0.0
    %293 = vmatpush1.msra.mxu0 0.0
    %294 = vmatprep.subr.mxu0 0.0
    %295 = vmatpush1.msra.mxu0 0.0
    %296 = vmatprep.subr.mxu0 0.0
    %297 = vmatpush1.msra.mxu0 0.0
    %298 = vmatprep.subr.mxu0 0.0
    %299 = vmatpush1.msra.mxu0 0.0
    %300 = vmatprep.subr.mxu0 0.0
    %301 = vmatpush1.msra.mxu0 0.0
    %302 = vmatprep.subr.mxu0 0.0
    %303 = vmatpush1.msra.mxu0 0.0
    %304 = vmatprep.subr.mxu0 0.0
    %305 = vmatpush1.msra.mxu0 0.0
    %306 = vmatprep.subr.mxu0 0.0
    %307 = vmatpush1.msra.mxu0 0.0
    %308 = vmatprep.subr.mxu0 0.0
    %309 = vmatpush1.msra.mxu0 0.0
    %310 = vmatprep.subr.mxu0 0.0
    %311 = vmatpush1.msra.mxu0 0.0
    %312 = vmatprep.subr.mxu0 0.0
    %313 = vmatpush1.msra.mxu0 0.0
    %314 = vmatprep.subr.mxu0 0.0
    %315 = vmatpush1.msra.mxu0 0.0
    %316 = vmatprep.subr.mxu0 0.0
    %317 = vmatpush1.msra.mxu0 0.0
    %318 = vmatprep.subr.mxu0 0.0
    %319 = vmatpush1.msra.mxu0 0.0
    %320 = vmatprep.subr.mxu0 0.0
    %321 = vmatpush1.msra.mxu0 0.0
    %322 = vmatprep.mubr.f32.mxu0 0.0
    %323 = vmatmul.mubr.f32.gmra.mrb[0].mxu0 %v253
    %v324 = vpop.f32.mrb[0].mxu0
    %v325 = vadd.f32 %v250, %v324
    %v326 = vpop.f32.mrb[0].mxu0
    %327 = vmatprep.mubr.f32.mxu0 0.0
    %328 = vmatmul.mubr.f32.gmra.mrb[0].mxu0 %v256
    %v329 = vpop.f32.mrb[0].mxu0
    %v330 = vadd.f32 %v250, %v329
    %v331 = vpop.f32.mrb[0].mxu0
    %332 = vdwg.mxu0
    %vm333 = vcmask 130048
    %334 = vst.msk [vmem:[#allocation5] sm:$0xff] %vm333, %v325
    %335 = vst.msk [vmem:[#allocation5 + $0x8] sm:$0xff] %vm333, %v330
    // Predicated region
    $region34: #{_mlp_apply.1} parent=1 // pred_check
      _
    $region35: #{_mlp_apply.1} parent=1 // pred_check_branch
      %337 = sbr.rel (0) target = $region37
    $region36: #{_mlp_apply.1} parent=1 // pred_region
      %s339 = ssub.s32 256, 256
      %340 = vsyncadd [#allocation4], %s339
      %s341 = sshll.u32 [#allocation5], 4
      %s342 = int_to_ptr.vmem [resolvable:$true] %s341
      %347 = dma.vmem_to_hbm [thread:$0]  %s342, 256, %s7, [#allocation4], 128, 128, 8
    $region37: #{_mlp_apply.1} parent=1 // pred_fallthru
      _
    // Predicated region
    $region38: #{_mlp_apply.1} parent=1 // pred_check
      _
    $region39: #{_mlp_apply.1} parent=1 // pred_check_branch
      %349 = sbr.rel (0) target = $region41
    $region40: #{_mlp_apply.1} parent=1 // pred_region
      %350 = dma.done [#allocation4], 256
    $region41: #{_mlp_apply.1} parent=1 // pred_fallthru
      _
    %351 = vsyncpa [#allocation3], 1
    %352 = vsyncpa [#allocation4], 1

</llo_original>
